<compile_context>
chip_gen: v5e
topology: v5e:2x2
jax: 0.10.0
libtpu: 0.0.40
codegen_flags: <defaults>
</compile_context>

<pallas_src>
import functools

import numpy as np
import jax
import jax.numpy as jnp
from jax.experimental import pallas as pl
from jax.experimental.pallas import tpu as pltpu


def _round_up(x, m):
    return (x + m - 1) // m * m


def _build_rag_edges(seg, hmap):
    """4-connectivity region-adjacency graph on a 2-D label map (host glue).

    Returns (uv, w): uv (n_edges, 2) int32 sorted label pairs, w (n_edges,)
    float32 mean boundary height-map value per edge.
    """
    # TODO(synk): approximates nrag.gridRag + nrag.accumulateEdgeStandartFeatures[:, 0]
    C = int(seg.max()) + 1
    us, vs, ws = [], [], []
    for sa, sb, ha, hb in (
        (seg[:, :-1], seg[:, 1:], hmap[:, :-1], hmap[:, 1:]),
        (seg[:-1, :], seg[1:, :], hmap[:-1, :], hmap[1:, :]),
    ):
        d = sa != sb
        us.append(np.minimum(sa, sb)[d])
        vs.append(np.maximum(sa, sb)[d])
        ws.append(0.5 * (ha + hb)[d])
    u = np.concatenate(us)
    v = np.concatenate(vs)
    w = np.concatenate(ws)
    if u.size == 0:
        return np.zeros((0, 2), np.int32), np.zeros((0,), np.float32)
    key = u.astype(np.int64) * C + v.astype(np.int64)
    uniq, inv = np.unique(key, return_inverse=True)
    sums = np.bincount(inv, weights=w, minlength=uniq.size)
    cnts = np.bincount(inv, minlength=uniq.size)
    uv = np.stack([uniq // C, uniq % C], axis=1).astype(np.int32)
    return uv, (sums / np.maximum(cnts, 1)).astype(np.float32)


def _rag_contrastive_kernel(labels_ref, x_ref, uvu_ref, uvv_ref, w_ref,
                            loss_ref, stats_ref, acc_ref, *,
                            delta_var, delta_dist, alpha, beta,
                            c_real, n_edges, e_real, edge_chunk):
    p = pl.program_id(0)        # 0: accumulate sums+counts   1: intra + finalize
    t = pl.program_id(1)        # pixel tile
    nt = pl.num_programs(1)

    tn = x_ref.shape[1]
    cp = stats_ref.shape[1]     # lane-major superpixel axis

    labels = labels_ref[...]                                        # (1, TN) int32
    x = x_ref[...]                                                  # (E_aug, TN) bf16
    cid = jax.lax.broadcasted_iota(jnp.int32, (cp, tn), 0)
    # membership one-hot built in-VMEM, directly as bf16 (exact 0/1); padded
    # pixels (label == -1) give an all-zero column.
    m = (cid == labels).astype(jnp.bfloat16)                        # (Cp, TN)

    @pl.when(p == 0)
    def _accumulate():
        @pl.when(t == 0)
        def _init():
            stats_ref[...] = jnp.zeros_like(stats_ref)
            acc_ref[0] = jnp.float32(0.0)

        # Single MXU op per tile: rows 0..E-1 accumulate per-superpixel
        # embedding sums, row E (the all-ones row of x) accumulates counts.
        stats_ref[...] += jax.lax.dot_general(
            x, m, dimension_numbers=(((1,), (1,)), ((), ())),
            preferred_element_type=jnp.float32)                     # (E_aug, Cp)

    @pl.when(p == 1)
    def _intra_and_finalize():
        @pl.when(t == 0)
        def _to_means():
            # sums -> means in place; row E becomes n_safe = max(count, 1).
            # NOTE: relies on the pass axis being the outermost grid axis
            # (Pallas iterates the last grid axis fastest).
            s = stats_ref[...]
            n_safe = jnp.maximum(s[e_real:e_real + 1, :], 1.0)      # (1, Cp)
            means = s / n_safe
            row = jax.lax.broadcasted_iota(jnp.int32, s.shape, 0)
            stats_ref[...] = jnp.where(row == e_real, n_safe, means)

        means_aug = stats_ref[...].astype(jnp.bfloat16)             # (E_aug, Cp)

        # Gather each pixel's own-superpixel mean (+ n_safe in row E) via MXU.
        means_px = jax.lax.dot_general(
            means_aug, m, dimension_numbers=(((1,), (0,)), ((), ())),
            preferred_element_type=jnp.float32)                     # (E_aug, TN)
        d_own = jnp.sum(means_px[:e_real] * x[:e_real], axis=0,
                        keepdims=True)                              # (1, TN)
        n_own = means_px[e_real:e_real + 1, :]                      # (1, TN)
        has_lab = (labels >= 0).astype(jnp.float32)                 # 1 real / 0 pad
        intra = (jnp.maximum(1.0 - d_own - delta_var, 0.0)
                 / jnp.maximum(n_own, 1.0))
        acc_ref[0] += jnp.sum(intra * has_lab) / c_real

        @pl.when(t == nt - 1)
        def _finalize():
            n_chunks = uvu_ref.shape[0]

            def edge_body(c, tot):
                uu = uvu_ref[pl.ds(c, 1), :]                        # (1, EC) int32
                vv = uvv_ref[pl.ds(c, 1), :]
                we = w_ref[pl.ds(c, 1), :]                          # (1, EC) f32
                ecid = jax.lax.broadcasted_iota(jnp.int32, (cp, edge_chunk), 0)
                ut = (ecid == uu).astype(jnp.bfloat16)              # (Cp, EC)
                vt = (ecid == vv).astype(jnp.bfloat16)
                eu = jax.lax.dot_general(
                    means_aug, ut, (((1,), (0,)), ((), ())),
                    preferred_element_type=jnp.float32)             # (E_aug, EC)
                ev = jax.lax.dot_general(
                    means_aug, vt, (((1,), (0,)), ((), ())),
                    preferred_element_type=jnp.float32)
                dot_uv = jnp.sum(eu[:e_real] * ev[:e_real], axis=0,
                                 keepdims=True)                     # (1, EC)
                inter = (1.0 - dot_uv) * we
                eidx = (c * edge_chunk
                        + jax.lax.broadcasted_iota(jnp.int32, (1, edge_chunk), 1))
                inter = jnp.where(eidx < n_edges,
                                  jnp.maximum(delta_dist - inter, 0.0), 0.0)
                return tot + jnp.sum(inter)

            tot = jax.lax.fori_loop(0, n_chunks, edge_body, jnp.float32(0.0))
            # NOTE: n_edges == 0 returns beta*intra (reference would produce NaN).
            loss_ref[0, 0] = (alpha * tot / float(max(n_edges, 1))
                              + beta * acc_ref[0])


def _pick_vmem_and_tile(cp, e_aug, n_pix):
    """Generation-aware VMEM limit and pixel-tile size."""
    try:
        vmem_cap = int(pltpu.get_tpu_info().vmem_capacity_bytes)
    except Exception:  # conservative fallback (v7x-sized VMEM)
        vmem_cap = 64 * 1024 * 1024
    vmem_limit = max(32 << 20, min(vmem_cap * 3 // 4, 100 << 20))
    # Budget the (Cp, tile_n) in-kernel temporaries (int32 iota + bf16 one-hot
    # + compare intermediates ~ 8 B/elem) to about half the scoped limit.
    budget = vmem_limit // 2
    tn = budget // max(cp * 8 + e_aug * 24 + 64, 1)
    tn = max(128, min(int(tn), 2048, _round_up(n_pix, 128)))
    tn = (tn // 256) * 256 if tn >= 256 else 128   # MXU-friendly multiple of 256
    return vmem_limit, tn


def rag_contrastive_loss(embeddings, sp_seg, affs, offs, delta_var, delta_dist,
                         alpha=1.0, beta=1.0, tile_n=None):
    """Forward pass of the RagContrastive module (returns the scalar loss)."""
    del offs  # only enters the reference module through the affinity channels
    # TODO(synk): the reference flips channels >= sep_chnl of affs; those
    # channels never feed the hmap/loss, so the flip is omitted here.
    emb = jnp.asarray(embeddings)
    _, E, H, W = emb.shape
    N = H * W

    seg = np.asarray(sp_seg)[0, 0].astype(np.int64)
    C = int(seg.max()) + 1

    # height map feeding the RAG edge weights (host-side glue, like nrag)
    affs0 = np.asarray(affs)[0].astype(np.float64)
    hmap = (affs0[0] + affs0[1]) / 2.0
    hmap = hmap - hmap.min()
    hmap = hmap / (hmap.max() + 1e-6)
    uv, w_np = _build_rag_edges(seg, hmap)
    n_edges = int(uv.shape[0])

    E_aug = _round_up(E + 1, 16)     # embeddings + ones row, bf16 sublane packing
    Cp = _round_up(C, 128)           # lane-major superpixel axis of the scratch

    vmem_limit, auto_tn = _pick_vmem_and_tile(Cp, E_aug, N)
    if tile_n is None:
        tile_n = auto_tn
    Np = _round_up(N, tile_n)
    n_tiles = Np // tile_n

    edge_chunk = min(512, _round_up(max(n_edges, 1), 128))
    Ep = _round_up(max(n_edges, 1), edge_chunk)
    n_chunks = Ep // edge_chunk

    # lane-major augmented embeddings (E_aug, Np) bf16: rows 0..E-1 embeddings,
    # row E all-ones (folds pixel counting into the pass-0 matmul), rest zeros.
    X = emb[0].reshape(E, N).astype(jnp.bfloat16)
    X_aug = jnp.zeros((E_aug, Np), jnp.bfloat16)
    X_aug = X_aug.at[:E, :N].set(X)
    X_aug = X_aug.at[E, :N].set(jnp.ones((N,), jnp.bfloat16))

    labels = np.full((1, Np), -1, dtype=np.int32)
    labels[0, :N] = seg.reshape(N).astype(np.int32)

    uvu = np.full((n_chunks, edge_chunk), -1, dtype=np.int32)
    uvv = np.full((n_chunks, edge_chunk), -1, dtype=np.int32)
    ww = np.zeros((n_chunks, edge_chunk), dtype=np.float32)
    if n_edges:
        uvu.reshape(-1)[:n_edges] = uv[:, 0]
        uvv.reshape(-1)[:n_edges] = uv[:, 1]
        ww.reshape(-1)[:n_edges] = w_np

    kernel = functools.partial(
        _rag_contrastive_kernel,
        delta_var=float(delta_var), delta_dist=float(delta_dist),
        alpha=float(alpha), beta=float(beta),
        c_real=float(C), n_edges=n_edges, e_real=int(E),
        edge_chunk=int(edge_chunk))

    loss = pl.pallas_call(
        kernel,
        out_shape=jax.ShapeDtypeStruct((1, 1), jnp.float32),
        grid=(2, n_tiles),
        in_specs=[
            pl.BlockSpec((1, tile_n), lambda p, t: (0, t)),       # labels (int32)
            pl.BlockSpec((E_aug, tile_n), lambda p, t: (0, t)),   # embeddings+ones
            pl.BlockSpec((n_chunks, edge_chunk), lambda p, t: (0, 0)),  # edge u ids
            pl.BlockSpec((n_chunks, edge_chunk), lambda p, t: (0, 0)),  # edge v ids
            pl.BlockSpec((n_chunks, edge_chunk), lambda p, t: (0, 0)),  # edge weights
        ],
        out_specs=pl.BlockSpec(memory_space=pltpu.MemorySpace.SMEM),
        scratch_shapes=[
            pltpu.VMEM((E_aug, Cp), jnp.float32),   # sums/counts -> means/n_safe
            pltpu.SMEM((1,), jnp.float32),          # intra-loss accumulator
        ],
        compiler_params=pltpu.CompilerParams(
            dimension_semantics=("arbitrary", "arbitrary"),
            vmem_limit_bytes=int(vmem_limit)),
    )(jnp.asarray(labels), X_aug, jnp.asarray(uvu), jnp.asarray(uvv),
      jnp.asarray(ww))
    return loss[0, 0]


def _reference_loss(embeddings, seg, uv, w, delta_var, delta_dist, alpha, beta):
    """Pure-JAX f32 reference of the same math (sanity check)."""
    _, E, H, W = embeddings.shape
    N = H * W
    C = int(seg.max()) + 1
    X = jnp.asarray(embeddings)[0].reshape(E, N).astype(jnp.float32)   # (E, N)
    lab = jnp.asarray(np.asarray(seg).reshape(N).astype(np.int32))
    M = (jnp.arange(C)[:, None] == lab[None, :]).astype(jnp.float32)   # (C, N)
    n = M.sum(axis=1, keepdims=True)
    means = (M @ X.T) / jnp.maximum(n, 1.0)
    d = means @ X                                                       # (C, N)
    intra = jnp.maximum(1.0 - d - delta_var, 0.0) / jnp.maximum(n, 1.0)
    intra = jnp.sum(intra * M) / C
    eu = means[jnp.asarray(uv[:, 0])]
    ev = means[jnp.asarray(uv[:, 1])]
    inter = (1.0 - jnp.sum(eu * ev, axis=1)) * jnp.asarray(w)
    inter = jnp.maximum(delta_dist - inter, 0.0).sum() / uv.shape[0]
    return alpha * inter + beta * intra


if __name__ == "__main__":
    key = jax.random.PRNGKey(0)
    k1, k2 = jax.random.split(key)

    H = W = 16
    E = 8
    # embeddings (1, E, H, W), unit-norm along channels (typical contrastive setup)
    emb = jax.random.normal(k1, (1, E, H, W), jnp.float32)
    emb = emb / jnp.linalg.norm(emb, axis=1, keepdims=True)

    # superpixel segmentation: 4x4 grid of 4x4 blocks -> 16 superpixels
    ys, xs = np.meshgrid(np.arange(H) // 4, np.arange(W) // 4, indexing="ij")
    seg_np = (ys * 4 + xs).astype(np.int32)
    sp_seg = jnp.asarray(seg_np)[None, None]                 # (1, 1, H, W)

    affs = jax.random.uniform(k2, (1, 4, H, W), jnp.float32)  # (1, A, H, W)
    offs = [[0, -1], [-1, 0], [0, -4], [-4, 0]]

    delta_var, delta_dist, alpha, beta = 0.1, 0.3, 1.0, 1.0

    loss = rag_contrastive_loss(emb, sp_seg, affs, offs,
                                delta_var, delta_dist, alpha, beta)
    loss = jax.block_until_ready(loss)

    # sanity check against a pure-JAX f32 reference of the same math
    affs0 = np.asarray(affs)[0].astype(np.float64)
    hmap = (affs0[0] + affs0[1]) / 2.0
    hmap = hmap - hmap.min()
    hmap = hmap / (hmap.max() + 1e-6)
    uv, w_np = _build_rag_edges(seg_np.astype(np.int64), hmap)
    ref = _reference_loss(emb, seg_np, uv, w_np, delta_var, delta_dist, alpha, beta)
    # kernel uses bf16 MXU operands with f32 accumulation -> loose-ish tolerance
    np.testing.assert_allclose(np.asarray(loss), np.asarray(ref), rtol=3e-2, atol=3e-3)

    print("KERNEL_OK")
</pallas_src>

<mosaic_0001>
module attributes {stable_mosaic.version = 11 : i64} {
  func.func @_rag_contrastive_kernel(%arg0: i32, %arg1: i32, %arg2: memref<1x256xi32, #tpu.memory_space<vmem>>, %arg3: memref<16x256xbf16, #tpu.memory_space<vmem>>, %arg4: memref<1x128xi32, #tpu.memory_space<vmem>>, %arg5: memref<1x128xi32, #tpu.memory_space<vmem>>, %arg6: memref<1x128xf32, #tpu.memory_space<vmem>>, %arg7: memref<1x1xf32, #tpu.memory_space<smem>>, %arg8: memref<16x128xf32, #tpu.memory_space<vmem>>, %arg9: memref<1xf32, #tpu.memory_space<smem>>) attributes {dimension_semantics = [#tpu.dimension_semantics<arbitrary>, #tpu.dimension_semantics<arbitrary>], iteration_bounds = array<i64: 2, 1>, scalar_prefetch = 0 : i64, scratch_operands = 2 : i64, tpu.core_type = #tpu.core_type<tc>, window_params = [{transform_indices = @transform_0, window_bounds = array<i64: 1, 256>}, {transform_indices = @transform_1, window_bounds = array<i64: 16, 256>}, {pipeline_mode = #tpu.pipeline_mode<synchronous>, transform_indices = @transform_2, window_bounds = array<i64: 1, 128>}, {pipeline_mode = #tpu.pipeline_mode<synchronous>, transform_indices = @transform_3, window_bounds = array<i64: 1, 128>}, {pipeline_mode = #tpu.pipeline_mode<synchronous>, transform_indices = @transform_4, window_bounds = array<i64: 1, 128>}, {transform_indices = @transform_5, window_bounds = array<i64: 1, 1>}]} {
    %c0 = arith.constant 0 : index
    %c0_0 = arith.constant 0 : index
    %0 = vector.load %arg2[%c0, %c0_0] : memref<1x256xi32, #tpu.memory_space<vmem>>, vector<1x256xi32>
    %c0_1 = arith.constant 0 : index
    %c0_2 = arith.constant 0 : index
    %1 = vector.load %arg3[%c0_1, %c0_2] : memref<16x256xbf16, #tpu.memory_space<vmem>>, vector<16x256xbf16>
    %2 = tpu.iota {dimensions = array<i32: 0>} : vector<128x256xi32>
    %3 = vector.broadcast %0 : vector<1x256xi32> to vector<128x256xi32>
    %4 = arith.cmpi eq, %2, %3 : vector<128x256xi32>
    %5 = arith.extui %4 : vector<128x256xi1> to vector<128x256xi32>
    %6 = arith.sitofp %5 : vector<128x256xi32> to vector<128x256xf32>
    %7 = arith.truncf %6 : vector<128x256xf32> to vector<128x256xbf16>
    %c0_i32 = arith.constant 0 : i32
    %8 = arith.cmpi eq, %arg0, %c0_i32 : i32
    %9 = arith.extui %8 : i1 to i32
    %c0_i32_3 = arith.constant 0 : i32
    %10 = arith.cmpi ne, %9, %c0_i32_3 : i32
    scf.if %10 {
      %c0_i32_5 = arith.constant 0 : i32
      %14 = arith.cmpi eq, %arg1, %c0_i32_5 : i32
      %15 = arith.extui %14 : i1 to i32
      %c0_i32_6 = arith.constant 0 : i32
      %16 = arith.cmpi ne, %15, %c0_i32_6 : i32
      scf.if %16 {
        %cst_11 = arith.constant 0.000000e+00 : f32
        %21 = vector.broadcast %cst_11 : f32 to vector<16x128xf32>
        %c0_12 = arith.constant 0 : index
        %c0_13 = arith.constant 0 : index
        %22 = vector.load %arg8[%c0_12, %c0_13] : memref<16x128xf32, #tpu.memory_space<vmem>>, vector<16x128xf32>
        tpu.vector_store %arg8[%c0_12, %c0_13], %21 {strides = array<i32>} : memref<16x128xf32, #tpu.memory_space<vmem>>, vector<16x128xf32>,
        %cst_14 = arith.constant 0.000000e+00 : f32
        %c0_15 = arith.constant 0 : index
        %23 = memref.load %arg9[%c0_15] : memref<1xf32, #tpu.memory_space<smem>>
        memref.store %cst_14, %arg9[%c0_15] : memref<1xf32, #tpu.memory_space<smem>>
      } else {
      }
      %c0_7 = arith.constant 0 : index
      %c0_8 = arith.constant 0 : index
      %17 = vector.load %arg8[%c0_7, %c0_8] : memref<16x128xf32, #tpu.memory_space<vmem>>, vector<16x128xf32>
      %cst = arith.constant dense<0.000000e+00> : vector<16x128xf32>
      %18 = tpu.matmul %1, %7, %cst {dimension_numbers = #tpu.dot_dimension_numbers<[1], [1], [0], [0], [0, 0, 1, 0], [], []>} : vector<16x256xbf16>, vector<128x256xbf16>, vector<16x128xf32> -> vector<16x128xf32>
      %19 = arith.addf %17, %18 : vector<16x128xf32>
      %c0_9 = arith.constant 0 : index
      %c0_10 = arith.constant 0 : index
      %20 = vector.load %arg8[%c0_9, %c0_10] : memref<16x128xf32, #tpu.memory_space<vmem>>, vector<16x128xf32>
      tpu.vector_store %arg8[%c0_9, %c0_10], %19 {strides = array<i32>} : memref<16x128xf32, #tpu.memory_space<vmem>>, vector<16x128xf32>,
    } else {
    }
    %c1_i32 = arith.constant 1 : i32
    %11 = arith.cmpi eq, %arg0, %c1_i32 : i32
    %12 = arith.extui %11 : i1 to i32
    %c0_i32_4 = arith.constant 0 : i32
    %13 = arith.cmpi ne, %12, %c0_i32_4 : i32
    scf.if %13 {
      %c0_i32_5 = arith.constant 0 : i32
      %14 = arith.cmpi eq, %arg1, %c0_i32_5 : i32
      %15 = arith.extui %14 : i1 to i32
      %c0_i32_6 = arith.constant 0 : i32
      %16 = arith.cmpi ne, %15, %c0_i32_6 : i32
      scf.if %16 {
        %c0_21 = arith.constant 0 : index
        %c0_22 = arith.constant 0 : index
        %52 = vector.load %arg8[%c0_21, %c0_22] : memref<16x128xf32, #tpu.memory_space<vmem>>, vector<16x128xf32>
        %53 = vector.extract_strided_slice %52 {offsets = [8, 0], sizes = [1, 128], strides = [1, 1]} : vector<16x128xf32> to vector<1x128xf32>
        %cst_23 = arith.constant 1.000000e+00 : f32
        %54 = vector.broadcast %cst_23 : f32 to vector<1x128xf32>
        %55 = arith.maximumf %53, %54 : vector<1x128xf32>
        %56 = vector.broadcast %55 : vector<1x128xf32> to vector<16x128xf32>
        %57 = arith.divf %52, %56 : vector<16x128xf32>
        %58 = tpu.iota {dimensions = array<i32: 0>} : vector<16x128xi32>
        %c8_i32 = arith.constant 8 : i32
        %59 = vector.broadcast %c8_i32 : i32 to vector<16x128xi32>
        %60 = arith.cmpi eq, %58, %59 : vector<16x128xi32>
        %61 = vector.shape_cast %55 : vector<1x128xf32> to vector<1x128xf32>
        %62 = vector.broadcast %61 : vector<1x128xf32> to vector<16x128xf32>
        %63 = arith.select %60, %62, %57 : vector<16x128xi1>, vector<16x128xf32>
        %c0_24 = arith.constant 0 : index
        %c0_25 = arith.constant 0 : index
        %64 = vector.load %arg8[%c0_24, %c0_25] : memref<16x128xf32, #tpu.memory_space<vmem>>, vector<16x128xf32>
        tpu.vector_store %arg8[%c0_24, %c0_25], %63 {strides = array<i32>} : memref<16x128xf32, #tpu.memory_space<vmem>>, vector<16x128xf32>,
      } else {
      }
      %c0_7 = arith.constant 0 : index
      %c0_8 = arith.constant 0 : index
      %17 = vector.load %arg8[%c0_7, %c0_8] : memref<16x128xf32, #tpu.memory_space<vmem>>, vector<16x128xf32>
      %18 = arith.truncf %17 : vector<16x128xf32> to vector<16x128xbf16>
      %cst = arith.constant dense<0.000000e+00> : vector<16x256xf32>
      %19 = tpu.matmul %18, %7, %cst {dimension_numbers = #tpu.dot_dimension_numbers<[1], [0], [0], [1], [0, 0, 1, 1], [], []>} : vector<16x128xbf16>, vector<128x256xbf16>, vector<16x256xf32> -> vector<16x256xf32>
      %20 = vector.extract_strided_slice %19 {offsets = [0, 0], sizes = [8, 256], strides = [1, 1]} : vector<16x256xf32> to vector<8x256xf32>
      %21 = vector.extract_strided_slice %1 {offsets = [0, 0], sizes = [8, 256], strides = [1, 1]} : vector<16x256xbf16> to vector<8x256xbf16>
      %22 = arith.extf %21 : vector<8x256xbf16> to vector<8x256xf32>
      %23 = arith.mulf %20, %22 : vector<8x256xf32>
      %cst_9 = arith.constant dense<0.000000e+00> : vector<256xf32>
      %24 = vector.multi_reduction <add>, %23, %cst_9 [0] : vector<8x256xf32> to vector<256xf32>
      %25 = vector.shape_cast %24 : vector<256xf32> to vector<1x256xf32>
      %26 = vector.extract_strided_slice %19 {offsets = [8, 0], sizes = [1, 256], strides = [1, 1]} : vector<16x256xf32> to vector<1x256xf32>
      %c0_i32_10 = arith.constant 0 : i32
      %27 = vector.broadcast %c0_i32_10 : i32 to vector<1x256xi32>
      %28 = arith.cmpi sge, %0, %27 : vector<1x256xi32>
      %29 = arith.extui %28 : vector<1x256xi1> to vector<1x256xi32>
      %30 = arith.sitofp %29 : vector<1x256xi32> to vector<1x256xf32>
      %cst_11 = arith.constant 1.000000e+00 : f32
      %31 = vector.broadcast %cst_11 : f32 to vector<1x256xf32>
      %32 = arith.subf %31, %25 : vector<1x256xf32>
      %cst_12 = arith.constant 1.000000e-01 : f32
      %33 = vector.broadcast %cst_12 : f32 to vector<1x256xf32>
      %34 = arith.subf %32, %33 : vector<1x256xf32>
      %cst_13 = arith.constant 0.000000e+00 : f32
      %35 = vector.broadcast %cst_13 : f32 to vector<1x256xf32>
      %36 = arith.maximumf %34, %35 : vector<1x256xf32>
      %cst_14 = arith.constant 1.000000e+00 : f32
      %37 = vector.broadcast %cst_14 : f32 to vector<1x256xf32>
      %38 = arith.maximumf %26, %37 : vector<1x256xf32>
      %39 = arith.divf %36, %38 : vector<1x256xf32>
      %c0_15 = arith.constant 0 : index
      %40 = memref.load %arg9[%c0_15] : memref<1xf32, #tpu.memory_space<smem>>
      %41 = arith.mulf %39, %30 : vector<1x256xf32>
      %42 = vector.shape_cast %41 : vector<1x256xf32> to vector<1x1x256xf32>
      %cst_16 = arith.constant dense<0.000000e+00> : vector<1xf32>
      %43 = vector.multi_reduction <add>, %42, %cst_16 [1, 2] : vector<1x1x256xf32> to vector<1xf32>
      %44 = vector.shape_cast %43 : vector<1xf32> to vector<1x1x1xf32>
      %45 = vector.extract %44[0, 0, 0] : f32 from vector<1x1x1xf32>
      %cst_17 = arith.constant 1.600000e+01 : f32
      %46 = arith.divf %45, %cst_17 : f32
      %47 = arith.addf %40, %46 : f32
      %c0_18 = arith.constant 0 : index
      %48 = memref.load %arg9[%c0_18] : memref<1xf32, #tpu.memory_space<smem>>
      memref.store %47, %arg9[%c0_18] : memref<1xf32, #tpu.memory_space<smem>>
      %c0_i32_19 = arith.constant 0 : i32
      %49 = arith.cmpi eq, %arg1, %c0_i32_19 : i32
      %50 = arith.extui %49 : i1 to i32
      %c0_i32_20 = arith.constant 0 : i32
      %51 = arith.cmpi ne, %50, %c0_i32_20 : i32
      scf.if %51 {
        %cst_21 = arith.constant 0.000000e+00 : f32
        %c0_i32_22 = arith.constant 0 : i32
        %52 = arith.index_cast %c0_i32_22 : i32 to index
        %c0_23 = arith.constant 0 : index
        %53 = vector.load %arg4[%52, %c0_23] : memref<1x128xi32, #tpu.memory_space<vmem>>, vector<1x128xi32>
        %54 = arith.index_cast %c0_i32_22 : i32 to index
        %c0_24 = arith.constant 0 : index
        %55 = vector.load %arg5[%54, %c0_24] : memref<1x128xi32, #tpu.memory_space<vmem>>, vector<1x128xi32>
        %56 = arith.index_cast %c0_i32_22 : i32 to index
        %c0_25 = arith.constant 0 : index
        %57 = vector.load %arg6[%56, %c0_25] : memref<1x128xf32, #tpu.memory_space<vmem>>, vector<1x128xf32>
        %58 = tpu.iota {dimensions = array<i32: 0>} : vector<128x128xi32>
        %59 = vector.broadcast %53 : vector<1x128xi32> to vector<128x128xi32>
        %60 = arith.cmpi eq, %58, %59 : vector<128x128xi32>
        %61 = arith.extui %60 : vector<128x128xi1> to vector<128x128xi32>
        %62 = arith.sitofp %61 : vector<128x128xi32> to vector<128x128xf32>
        %63 = arith.truncf %62 : vector<128x128xf32> to vector<128x128xbf16>
        %64 = vector.broadcast %55 : vector<1x128xi32> to vector<128x128xi32>
        %65 = arith.cmpi eq, %58, %64 : vector<128x128xi32>
        %66 = arith.extui %65 : vector<128x128xi1> to vector<128x128xi32>
        %67 = arith.sitofp %66 : vector<128x128xi32> to vector<128x128xf32>
        %68 = arith.truncf %67 : vector<128x128xf32> to vector<128x128xbf16>
        %cst_26 = arith.constant dense<0.000000e+00> : vector<16x128xf32>
        %69 = tpu.matmul %18, %63, %cst_26 {dimension_numbers = #tpu.dot_dimension_numbers<[1], [0], [0], [1], [0, 0, 1, 1], [], []>} : vector<16x128xbf16>, vector<128x128xbf16>, vector<16x128xf32> -> vector<16x128xf32>
        %cst_27 = arith.constant dense<0.000000e+00> : vector<16x128xf32>
        %70 = tpu.matmul %18, %68, %cst_27 {dimension_numbers = #tpu.dot_dimension_numbers<[1], [0], [0], [1], [0, 0, 1, 1], [], []>} : vector<16x128xbf16>, vector<128x128xbf16>, vector<16x128xf32> -> vector<16x128xf32>
        %71 = vector.extract_strided_slice %69 {offsets = [0, 0], sizes = [8, 128], strides = [1, 1]} : vector<16x128xf32> to vector<8x128xf32>
        %72 = vector.extract_strided_slice %70 {offsets = [0, 0], sizes = [8, 128], strides = [1, 1]} : vector<16x128xf32> to vector<8x128xf32>
        %73 = arith.mulf %71, %72 : vector<8x128xf32>
        %cst_28 = arith.constant dense<0.000000e+00> : vector<128xf32>
        %74 = vector.multi_reduction <add>, %73, %cst_28 [0] : vector<8x128xf32> to vector<128xf32>
        %75 = vector.shape_cast %74 : vector<128xf32> to vector<1x128xf32>
        %cst_29 = arith.constant 1.000000e+00 : f32
        %76 = vector.broadcast %cst_29 : f32 to vector<1x128xf32>
        %77 = arith.subf %76, %75 : vector<1x128xf32>
        %78 = arith.mulf %77, %57 : vector<1x128xf32>
        %c128_i32 = arith.constant 128 : i32
        %79 = arith.muli %c0_i32_22, %c128_i32 : i32
        %80 = tpu.iota {dimensions = array<i32: 1>} : vector<1x128xi32>
        %81 = vector.broadcast %79 : i32 to vector<1x128xi32>
        %82 = arith.addi %81, %80 : vector<1x128xi32>
        %c24_i32 = arith.constant 24 : i32
        %83 = vector.broadcast %c24_i32 : i32 to vector<1x128xi32>
        %84 = arith.cmpi slt, %82, %83 : vector<1x128xi32>
        %cst_30 = arith.constant 3.000000e-01 : f32
        %85 = vector.broadcast %cst_30 : f32 to vector<1x128xf32>
        %86 = arith.subf %85, %78 : vector<1x128xf32>
        %cst_31 = arith.constant 0.000000e+00 : f32
        %87 = vector.broadcast %cst_31 : f32 to vector<1x128xf32>
        %88 = arith.maximumf %86, %87 : vector<1x128xf32>
        %cst_32 = arith.constant 0.000000e+00 : f32
        %89 = vector.broadcast %cst_32 : f32 to vector<1x128xf32>
        %90 = arith.select %84, %88, %89 : vector<1x128xi1>, vector<1x128xf32>
        %91 = vector.shape_cast %90 : vector<1x128xf32> to vector<1x1x128xf32>
        %cst_33 = arith.constant dense<0.000000e+00> : vector<1xf32>
        %92 = vector.multi_reduction <add>, %91, %cst_33 [1, 2] : vector<1x1x128xf32> to vector<1xf32>
        %93 = vector.shape_cast %92 : vector<1xf32> to vector<1x1x1xf32>
        %94 = vector.extract %93[0, 0, 0] : f32 from vector<1x1x1xf32>
        %95 = arith.addf %cst_21, %94 : f32
        %c1_i32_34 = arith.constant 1 : i32
        %cst_35 = arith.constant 1.000000e+00 : f32
        %96 = arith.mulf %cst_35, %95 : f32
        %cst_36 = arith.constant 2.400000e+01 : f32
        %97 = arith.divf %96, %cst_36 : f32
        %c0_37 = arith.constant 0 : index
        %98 = memref.load %arg9[%c0_37] : memref<1xf32, #tpu.memory_space<smem>>
        %cst_38 = arith.constant 1.000000e+00 : f32
        %99 = arith.mulf %cst_38, %98 : f32
        %100 = arith.addf %97, %99 : f32
        %c0_39 = arith.constant 0 : index
        %c0_40 = arith.constant 0 : index
        %101 = memref.load %arg7[%c0_39, %c0_40] : memref<1x1xf32, #tpu.memory_space<smem>>
        memref.store %100, %arg7[%c0_39, %c0_40] : memref<1x1xf32, #tpu.memory_space<smem>>
      } else {
      }
    } else {
    }
    return
  }
  func.func @transform_0(%arg0: i32, %arg1: i32) -> (i32, i32) {
    %c0_i32 = arith.constant 0 : i32
    %c0_i32_0 = arith.constant 0 : i32
    return %c0_i32, %arg1 : i32, i32
  }
  func.func @transform_1(%arg0: i32, %arg1: i32) -> (i32, i32) {
    %c0_i32 = arith.constant 0 : i32
    %c0_i32_0 = arith.constant 0 : i32
    return %c0_i32, %arg1 : i32, i32
  }
  func.func @transform_2(%arg0: i32, %arg1: i32) -> (i32, i32) {
    %c0_i32 = arith.constant 0 : i32
    %c0_i32_0 = arith.constant 0 : i32
    %c0_i32_1 = arith.constant 0 : i32
    return %c0_i32, %c0_i32_0 : i32, i32
  }
  func.func @transform_3(%arg0: i32, %arg1: i32) -> (i32, i32) {
    %c0_i32 = arith.constant 0 : i32
    %c0_i32_0 = arith.constant 0 : i32
    %c0_i32_1 = arith.constant 0 : i32
    return %c0_i32, %c0_i32_0 : i32, i32
  }
  func.func @transform_4(%arg0: i32, %arg1: i32) -> (i32, i32) {
    %c0_i32 = arith.constant 0 : i32
    %c0_i32_0 = arith.constant 0 : i32
    %c0_i32_1 = arith.constant 0 : i32
    return %c0_i32, %c0_i32_0 : i32, i32
  }
  func.func @transform_5(%arg0: i32, %arg1: i32) -> (i32, i32) {
    %c0_i32 = arith.constant 0 : i32
    %c0_i32_0 = arith.constant 0 : i32
    %c0_i32_1 = arith.constant 0 : i32
    return %c0_i32, %c0_i32_0 : i32, i32
  }
}

</mosaic_0001>

<llo_original>
// kernel: tpu_custom_call.1
$region0: #{tpu_custom_call.1}
  #allocation0 [shape = 'u32[]', space=smem, size = 0x4, offset = 0x4, fixed_abs, tag = 'smem constant byte address 0x4 - core index']
  #allocation1 [shape = 'u32[72,128]{1,0:T(1,128)}', space=vmem, size = 0x9000, scoped, tag = 'internal scratch']
  #allocation2 [shape = 'f32[16,128]{1,0:T(8,128)}', space=vmem, size = 0x2000, scoped, tag = 'scratch operand']
  #allocation3 [shape = 'f32[1]{0:T(128)}', space=smem, size = 0x200, scoped, tag = 'scratch operand']
  %s0 = inlined_call_operand.hbm [shape: s32[1,256], index: 0, kind: input, shape index: {}]
  %s1 = inlined_call_operand.hbm [shape: bf16[16,256], index: 1, kind: input, shape index: {}]
  %s2 = inlined_call_operand.vmem [shape: s32[1,128], index: 2, kind: input, shape index: {}]
  %s3 = inlined_call_operand.vmem [shape: s32[1,128], index: 3, kind: input, shape index: {}]
  %s4 = inlined_call_operand.vmem [shape: f32[1,128], index: 4, kind: input, shape index: {}]
  %s5 = inlined_call_operand.hbm [shape: f32[1,1], index: 5, kind: output, shape index: {}]
  %s6 = sld [smem:[#allocation0]]
  $region81: #{tpu_custom_call.1} parent=0
    _
  %s8 = ssub.s32 1, %s6
  %s9 = scalar_select 0, %s8, %s6
  $region1: #{tpu_custom_call.1} parent=0
    #allocation4 [shape = 'u8[1024]{0}', space=vmem, size = 0x400, scoped, tag = 'input window, operand 0, single buffered']
    #allocation5 [shape = 's32[2]{0}', space=sflag, size = 0x8, scoped, tag = 'scoped memory for tpu_custom_call.1']
    #allocation6 [shape = 's32[2]{0}', space=sflag, size = 0x8, scoped, tag = 'scoped memory for tpu_custom_call.1']
    #allocation7 [shape = 'u8[8192]{0}', space=vmem, size = 0x2000, scoped, tag = 'input window, operand 1, single buffered']
    #allocation8 [shape = 's32[1]{0}', space=sflag, size = 0x4, scoped, tag = 'scoped memory for tpu_custom_call.1']
    #allocation9 [shape = 'u8[512]{0}', space=smem, size = 0x200, scoped, tag = 'output window, operand 0, single buffered']
    %10 = vsyncpa [#allocation5], 0
    %11 = vsyncpa [#allocation8], 0
    %12 = vsyncpa [#allocation6], 0
    loop: start=0, step=1, limit=4
    $region2: #{tpu_custom_call.1} parent=1 // loop_pre_header
      _
    $region3: #{tpu_custom_call.1} parent=1 // loop_header
      %s14 = sphi 0, %s18
      %p15 = scmp.ge.s32.totalorder %s14, 4
      %s21 = sphi 0, %s33
      %s22 = sphi 0, %s29
      %s23 = sphi 0, %s21
      %s24 = sphi 0, %s22
      %s25 = sphi 0, %s23
      %s26 = sphi 0, %s24
      %s36 = sphi 0, %s38
      %s39 = sphi 0, %s36
      %s40 = sphi 0, %s39
      %s56 = sphi 0, %s40
      %s62 = sphi 0, %s64
      %s65 = sphi 0, %s62
      %s66 = sphi 0, %s65
      %s82 = sphi 0, %s66
      %s86 = sphi 0, %s86
      %s88 = sphi 0, %s86
      %s89 = sphi 0, %s88
      %s103 = sphi 0, %s89
      %s107 = sphi 0, %s107
      %s109 = sphi 0, %s107
      %s110 = sphi 0, %s109
      %s124 = sphi 0, %s110
      %s128 = sphi 0, %s128
      %s130 = sphi 0, %s128
      %s131 = sphi 0, %s130
      %s145 = sphi 0, %s131
      %s149 = sphi 0, %s149
      %s151 = sphi 0, %s149
      %s152 = sphi 0, %s151
      %s166 = sphi 0, %s152
    $region4: #{tpu_custom_call.1} parent=1 // loop_header_branch
      %17 = sbr.rel (%p15) target = $region8
    $region5: #{tpu_custom_call.1} parent=1 // loop_body
      %s19 = ssub.s32 %s14, 1
      %s20 = ssub.s32 %s14, 2
      %s27 = sadd.s32 1, %s22
      %p28 = scmp.ge.s32.totalorder %s27, 1
      %s29 = scalar_select %p28, 0, %s27
      %s30 = sadd.s32 1, %s21
      %s31 = scalar_select %p28, %s30, %s21
      %p32 = scmp.ge.s32.totalorder %s31, 2
      %s33 = scalar_select %p32, 0, %s31
      %s34 = ssub.s32 %s22, %s29
      %p35 = scmp.eq.s32.totalorder %s34, 0
      %s37 = sadd.s32 %s36, 1
      %s38 = scalar_select %p35, %s36, %s37
      %p41 = pneg %p35
      %p42 = scmp.eq.s32.totalorder %s14, 1
      %p43 = por %p41, %p42
      %p44 = scmp.ne.s32.totalorder %s36, %s39
      %p45 = scmp.eq.s32.totalorder %s14, 0
      %p46 = por %p44, %p45
      %p47 = scmp.ne.s32.totalorder %s36, %s39
      %p48 = scmp.eq.s32.totalorder %s19, 1
      %p49 = por %p47, %p48
      %p50 = scmp.ne.s32.totalorder %s39, %s40
      %p51 = scmp.eq.s32.totalorder %s19, 0
      %p52 = por %p50, %p51
      %p53 = scmp.ne.s32.totalorder %s39, %s40
      %p54 = scmp.eq.s32.totalorder %s20, 1
      %p55 = por %p53, %p54
      %p57 = scmp.ne.s32.totalorder %s40, %s56
      %p58 = scmp.eq.s32.totalorder %s20, 0
      %p59 = por %p57, %p58
      %s60 = ssub.s32 %s22, %s29
      %p61 = scmp.eq.s32.totalorder %s60, 0
      %s63 = sadd.s32 %s62, 1
      %s64 = scalar_select %p61, %s62, %s63
      %p67 = pneg %p61
      %p68 = scmp.eq.s32.totalorder %s14, 1
      %p69 = por %p67, %p68
      %p70 = scmp.ne.s32.totalorder %s62, %s65
      %p71 = scmp.eq.s32.totalorder %s14, 0
      %p72 = por %p70, %p71
      %p73 = scmp.ne.s32.totalorder %s62, %s65
      %p74 = scmp.eq.s32.totalorder %s19, 1
      %p75 = por %p73, %p74
      %p76 = scmp.ne.s32.totalorder %s65, %s66
      %p77 = scmp.eq.s32.totalorder %s19, 0
      %p78 = por %p76, %p77
      %p79 = scmp.ne.s32.totalorder %s65, %s66
      %p80 = scmp.eq.s32.totalorder %s20, 1
      %p81 = por %p79, %p80
      %p83 = scmp.ne.s32.totalorder %s66, %s82
      %p84 = scmp.eq.s32.totalorder %s20, 0
      %p85 = por %p83, %p84
      %s87 = sadd.s32 %s86, 1
      %p90 = scmp.eq.s32.totalorder %s14, 1
      %p91 = scmp.ne.s32.totalorder %s86, %s88
      %p92 = scmp.eq.s32.totalorder %s14, 0
      %p93 = por %p91, %p92
      %p94 = scmp.ne.s32.totalorder %s86, %s88
      %p95 = scmp.eq.s32.totalorder %s19, 1
      %p96 = por %p94, %p95
      %p97 = scmp.ne.s32.totalorder %s88, %s89
      %p98 = scmp.eq.s32.totalorder %s19, 0
      %p99 = por %p97, %p98
      %p100 = scmp.ne.s32.totalorder %s88, %s89
      %p101 = scmp.eq.s32.totalorder %s20, 1
      %p102 = por %p100, %p101
      %p104 = scmp.ne.s32.totalorder %s89, %s103
      %p105 = scmp.eq.s32.totalorder %s20, 0
      %p106 = por %p104, %p105
      %s108 = sadd.s32 %s107, 1
      %p111 = scmp.eq.s32.totalorder %s14, 1
      %p112 = scmp.ne.s32.totalorder %s107, %s109
      %p113 = scmp.eq.s32.totalorder %s14, 0
      %p114 = por %p112, %p113
      %p115 = scmp.ne.s32.totalorder %s107, %s109
      %p116 = scmp.eq.s32.totalorder %s19, 1
      %p117 = por %p115, %p116
      %p118 = scmp.ne.s32.totalorder %s109, %s110
      %p119 = scmp.eq.s32.totalorder %s19, 0
      %p120 = por %p118, %p119
      %p121 = scmp.ne.s32.totalorder %s109, %s110
      %p122 = scmp.eq.s32.totalorder %s20, 1
      %p123 = por %p121, %p122
      %p125 = scmp.ne.s32.totalorder %s110, %s124
      %p126 = scmp.eq.s32.totalorder %s20, 0
      %p127 = por %p125, %p126
      %s129 = sadd.s32 %s128, 1
      %p132 = scmp.eq.s32.totalorder %s14, 1
      %p133 = scmp.ne.s32.totalorder %s128, %s130
      %p134 = scmp.eq.s32.totalorder %s14, 0
      %p135 = por %p133, %p134
      %p136 = scmp.ne.s32.totalorder %s128, %s130
      %p137 = scmp.eq.s32.totalorder %s19, 1
      %p138 = por %p136, %p137
      %p139 = scmp.ne.s32.totalorder %s130, %s131
      %p140 = scmp.eq.s32.totalorder %s19, 0
      %p141 = por %p139, %p140
      %p142 = scmp.ne.s32.totalorder %s130, %s131
      %p143 = scmp.eq.s32.totalorder %s20, 1
      %p144 = por %p142, %p143
      %p146 = scmp.ne.s32.totalorder %s131, %s145
      %p147 = scmp.eq.s32.totalorder %s20, 0
      %p148 = por %p146, %p147
      %s150 = sadd.s32 %s149, 1
      %p153 = scmp.eq.s32.totalorder %s14, 1
      %p154 = scmp.ne.s32.totalorder %s149, %s151
      %p155 = scmp.eq.s32.totalorder %s14, 0
      %p156 = por %p154, %p155
      %p157 = scmp.ne.s32.totalorder %s149, %s151
      %p158 = scmp.eq.s32.totalorder %s19, 1
      %p159 = por %p157, %p158
      %p160 = scmp.ne.s32.totalorder %s151, %s152
      %p161 = scmp.eq.s32.totalorder %s19, 0
      %p162 = por %p160, %p161
      %p163 = scmp.ne.s32.totalorder %s151, %s152
      %p164 = scmp.eq.s32.totalorder %s20, 1
      %p165 = por %p163, %p164
      %p167 = scmp.ne.s32.totalorder %s152, %s166
      %p168 = scmp.eq.s32.totalorder %s20, 0
      %p169 = por %p167, %p168
      %p170 = scmp.le.s32.totalorder 1, %s14
      %p171 = scmp.lt.s32.totalorder %s14, 3
      %p172 = pnand %p170, %p171
      %p173 = pneg %p172
      // Predicated region
      $region9: #{tpu_custom_call.1} parent=5 // pred_check
        _
      $region10: #{tpu_custom_call.1} parent=5 // pred_check_branch
        %175 = sbr.rel (%p172) target = $region12
      $region11: #{tpu_custom_call.1} parent=5 // pred_region
        %s176 = ssub.s32 %s14, 1
        // Predicated region
        $region13: #{tpu_custom_call.1} parent=11 // pred_check
          %p177 = pneg %p52
        $region14: #{tpu_custom_call.1} parent=11 // pred_check_branch
          %179 = sbr.rel (%p177) target = $region16
        $region15: #{tpu_custom_call.1} parent=11 // pred_region
          %s180 = smul.u32 2, %s24
          %182 = vsyncadd [#allocation5], 0
          %s183 = scalar_lea.hbm %s0, %s180
          %s185 = sshll.u32 %s183, 4
          %s186 = int_to_ptr.hbm [resolvable:$true] %s185
          %s187 = sshll.u32 [#allocation4], 4
          %s188 = int_to_ptr.vmem [resolvable:$true] %s187
          %190 = dma.hbm_to_vmem [thread:$0]  %s186, 32, %s188, [#allocation5]
        $region16: #{tpu_custom_call.1} parent=11 // pred_fallthru
          _
        // Predicated region
        $region17: #{tpu_custom_call.1} parent=11 // pred_check
          %p191 = pneg %p78
        $region18: #{tpu_custom_call.1} parent=11 // pred_check_branch
          %193 = sbr.rel (%p191) target = $region20
        $region19: #{tpu_custom_call.1} parent=11 // pred_region
          %s194 = smul.u32 2, %s24
          %196 = vsyncadd [#allocation8], 0
          %s197 = smul.addr %s194, 4
          %s198 = scalar_lea.hbm %s1, %s197
          %s199 = sshll.u32 %s198, 4
          %s200 = int_to_ptr.hbm [resolvable:$true] %s199
          %s201 = sshll.u32 [#allocation7], 4
          %s202 = int_to_ptr.vmem [resolvable:$true] %s201
          %207 = dma.hbm_to_vmem [thread:$0]  %s200, 256, %s202, [#allocation8], 128, 128, 8
        $region20: #{tpu_custom_call.1} parent=11 // pred_fallthru
          _
        // Predicated region
        $region21: #{tpu_custom_call.1} parent=11 // pred_check
          %p208 = pneg %p99
        $region22: #{tpu_custom_call.1} parent=11 // pred_check_branch
          %210 = sbr.rel (%p208) target = $region24
        $region23: #{tpu_custom_call.1} parent=11 // pred_region
          _
        $region24: #{tpu_custom_call.1} parent=11 // pred_fallthru
          _
        // Predicated region
        $region25: #{tpu_custom_call.1} parent=11 // pred_check
          %p211 = pneg %p120
        $region26: #{tpu_custom_call.1} parent=11 // pred_check_branch
          %213 = sbr.rel (%p211) target = $region28
        $region27: #{tpu_custom_call.1} parent=11 // pred_region
          _
        $region28: #{tpu_custom_call.1} parent=11 // pred_fallthru
          _
        // Predicated region
        $region29: #{tpu_custom_call.1} parent=11 // pred_check
          %p214 = pneg %p141
        $region30: #{tpu_custom_call.1} parent=11 // pred_check_branch
          %216 = sbr.rel (%p214) target = $region32
        $region31: #{tpu_custom_call.1} parent=11 // pred_region
          _
        $region32: #{tpu_custom_call.1} parent=11 // pred_fallthru
          _
      $region12: #{tpu_custom_call.1} parent=5 // pred_fallthru
        _
      %p217 = scmp.lt.s32.totalorder %s14, 2
      // Predicated region
      $region33: #{tpu_custom_call.1} parent=5 // pred_check
        %p218 = pneg %p217
      $region34: #{tpu_custom_call.1} parent=5 // pred_check_branch
        %220 = sbr.rel (%p218) target = $region36
      $region35: #{tpu_custom_call.1} parent=5 // pred_region
        _
      $region36: #{tpu_custom_call.1} parent=5 // pred_fallthru
        _
      %p221 = scmp.le.s32.totalorder 1, %s14
      %p222 = scmp.lt.s32.totalorder %s14, 3
      %p223 = pnand %p221, %p222
      %p224 = pneg %p223
      // Predicated region
      $region37: #{tpu_custom_call.1} parent=5 // pred_check
        _
      $region38: #{tpu_custom_call.1} parent=5 // pred_check_branch
        %226 = sbr.rel (%p223) target = $region40
      $region39: #{tpu_custom_call.1} parent=5 // pred_region
        %s227 = ssub.s32 %s14, 1
        // Predicated region
        $region41: #{tpu_custom_call.1} parent=39 // pred_check
          %p228 = pneg %p52
        $region42: #{tpu_custom_call.1} parent=39 // pred_check_branch
          %230 = sbr.rel (%p228) target = $region44
        $region43: #{tpu_custom_call.1} parent=39 // pred_region
          %232 = dma.done [#allocation5], 32
        $region44: #{tpu_custom_call.1} parent=39 // pred_fallthru
          _
        // Predicated region
        $region45: #{tpu_custom_call.1} parent=39 // pred_check
          %p233 = pneg %p78
        $region46: #{tpu_custom_call.1} parent=39 // pred_check_branch
          %235 = sbr.rel (%p233) target = $region48
        $region47: #{tpu_custom_call.1} parent=39 // pred_region
          %237 = dma.done [#allocation8], 256
        $region48: #{tpu_custom_call.1} parent=39 // pred_fallthru
          _
        %p238 = pneg %p52
        %p239 = pneg %p49
        %p240 = pneg %p78
        %p241 = pneg %p75
        %p242 = pneg %p99
        %p243 = pneg %p96
        %p244 = pneg %p120
        %p245 = pneg %p117
        %p246 = pneg %p141
        %p247 = pneg %p138
        %p248 = pneg %p162
        %p249 = pneg %p159
        %s250 = smul.u32 2, %s24
        %s251 = smul.u32 2, %s24
        %v252 = vld [vmem:[#allocation4] sm:$0x3]
        %v253 = vld [vmem:[#allocation7] sm:$0xff]
        %v254 = vld [vmem:[#allocation7 + $0x8] sm:$0xff]
        %v255 = vlaneseq
        %v256 = vshrl.u32 %v255, 7
        %v257 = vadd.s32 %v256, 8
        %v258 = vadd.s32 %v256, 16
        %v259 = vadd.s32 %v256, 24
        %v260 = vadd.s32 %v256, 32
        %v261 = vadd.s32 %v256, 40
        %v262 = vadd.s32 %v256, 48
        %v263 = vadd.s32 %v256, 56
        %v264 = vadd.s32 %v256, 64
        %v265 = vadd.s32 %v256, 72
        %v266 = vadd.s32 %v256, 80
        %v267 = vadd.s32 %v256, 88
        %v268 = vadd.s32 %v256, 96
        %v269 = vadd.s32 %v256, 104
        %v270 = vadd.s32 %v256, 112
        %v271 = vadd.s32 %v256, 120
        %v272 = vperm.slane %v252, 0
        %v273 = vperm.slane %v252, 1
        %vm274 = vcmp.eq.s32.totalorder %v256, %v272
        %vm275 = vcmp.eq.s32.totalorder %v256, %v273
        %vm276 = vcmp.eq.s32.totalorder %v257, %v272
        %vm277 = vcmp.eq.s32.totalorder %v257, %v273
        %vm278 = vcmp.eq.s32.totalorder %v258, %v272
        %vm279 = vcmp.eq.s32.totalorder %v258, %v273
        %vm280 = vcmp.eq.s32.totalorder %v259, %v272
        %vm281 = vcmp.eq.s32.totalorder %v259, %v273
        %vm282 = vcmp.eq.s32.totalorder %v260, %v272
        %vm283 = vcmp.eq.s32.totalorder %v260, %v273
        %vm284 = vcmp.eq.s32.totalorder %v261, %v272
        %vm285 = vcmp.eq.s32.totalorder %v261, %v273
        %vm286 = vcmp.eq.s32.totalorder %v262, %v272
        %vm287 = vcmp.eq.s32.totalorder %v262, %v273
        %vm288 = vcmp.eq.s32.totalorder %v263, %v272
        %vm289 = vcmp.eq.s32.totalorder %v263, %v273
        %vm290 = vcmp.eq.s32.totalorder %v264, %v272
        %vm291 = vcmp.eq.s32.totalorder %v264, %v273
        %vm292 = vcmp.eq.s32.totalorder %v265, %v272
        %vm293 = vcmp.eq.s32.totalorder %v265, %v273
        %vm294 = vcmp.eq.s32.totalorder %v266, %v272
        %vm295 = vcmp.eq.s32.totalorder %v266, %v273
        %vm296 = vcmp.eq.s32.totalorder %v267, %v272
        %vm297 = vcmp.eq.s32.totalorder %v267, %v273
        %vm298 = vcmp.eq.s32.totalorder %v268, %v272
        %vm299 = vcmp.eq.s32.totalorder %v268, %v273
        %vm300 = vcmp.eq.s32.totalorder %v269, %v272
        %vm301 = vcmp.eq.s32.totalorder %v269, %v273
        %vm302 = vcmp.eq.s32.totalorder %v270, %v272
        %vm303 = vcmp.eq.s32.totalorder %v270, %v273
        %vm304 = vcmp.eq.s32.totalorder %v271, %v272
        %vm305 = vcmp.eq.s32.totalorder %v271, %v273
        %v306 = vsel %vm274, 1, 0
        %v307 = vsel %vm275, 1, 0
        %v308 = vsel %vm276, 1, 0
        %v309 = vsel %vm277, 1, 0
        %v310 = vsel %vm278, 1, 0
        %v311 = vsel %vm279, 1, 0
        %v312 = vsel %vm280, 1, 0
        %v313 = vsel %vm281, 1, 0
        %v314 = vsel %vm282, 1, 0
        %v315 = vsel %vm283, 1, 0
        %v316 = vsel %vm284, 1, 0
        %v317 = vsel %vm285, 1, 0
        %v318 = vsel %vm286, 1, 0
        %v319 = vsel %vm287, 1, 0
        %v320 = vsel %vm288, 1, 0
        %v321 = vsel %vm289, 1, 0
        %v322 = vsel %vm290, 1, 0
        %v323 = vsel %vm291, 1, 0
        %v324 = vsel %vm292, 1, 0
        %v325 = vsel %vm293, 1, 0
        %v326 = vsel %vm294, 1, 0
        %v327 = vsel %vm295, 1, 0
        %v328 = vsel %vm296, 1, 0
        %v329 = vsel %vm297, 1, 0
        %v330 = vsel %vm298, 1, 0
        %v331 = vsel %vm299, 1, 0
        %v332 = vsel %vm300, 1, 0
        %v333 = vsel %vm301, 1, 0
        %v334 = vsel %vm302, 1, 0
        %v335 = vsel %vm303, 1, 0
        %v336 = vsel %vm304, 1, 0
        %v337 = vsel %vm305, 1, 0
        %v338 = vcvt.s32.f32 %v306
        %v339 = vcvt.s32.f32 %v307
        %v340 = vcvt.s32.f32 %v308
        %v341 = vcvt.s32.f32 %v309
        %v342 = vcvt.s32.f32 %v310
        %v343 = vcvt.s32.f32 %v311
        %v344 = vcvt.s32.f32 %v312
        %v345 = vcvt.s32.f32 %v313
        %v346 = vcvt.s32.f32 %v314
        %v347 = vcvt.s32.f32 %v315
        %v348 = vcvt.s32.f32 %v316
        %v349 = vcvt.s32.f32 %v317
        %v350 = vcvt.s32.f32 %v318
        %v351 = vcvt.s32.f32 %v319
        %v352 = vcvt.s32.f32 %v320
        %v353 = vcvt.s32.f32 %v321
        %v354 = vcvt.s32.f32 %v322
        %v355 = vcvt.s32.f32 %v323
        %v356 = vcvt.s32.f32 %v324
        %v357 = vcvt.s32.f32 %v325
        %v358 = vcvt.s32.f32 %v326
        %v359 = vcvt.s32.f32 %v327
        %v360 = vcvt.s32.f32 %v328
        %v361 = vcvt.s32.f32 %v329
        %v362 = vcvt.s32.f32 %v330
        %v363 = vcvt.s32.f32 %v331
        %v364 = vcvt.s32.f32 %v332
        %v365 = vcvt.s32.f32 %v333
        %v366 = vcvt.s32.f32 %v334
        %v367 = vcvt.s32.f32 %v335
        %v368 = vcvt.s32.f32 %v336
        %v369 = vcvt.s32.f32 %v337
        %v370 = vpack.c.bf16 %v340, %v338
        %v371 = vpack.c.bf16 %v341, %v339
        %v372 = vpack.c.bf16 %v344, %v342
        %v373 = vpack.c.bf16 %v345, %v343
        %v374 = vpack.c.bf16 %v348, %v346
        %v375 = vpack.c.bf16 %v349, %v347
        %v376 = vpack.c.bf16 %v352, %v350
        %v377 = vpack.c.bf16 %v353, %v351
        %v378 = vpack.c.bf16 %v356, %v354
        %v379 = vpack.c.bf16 %v357, %v355
        %v380 = vpack.c.bf16 %v360, %v358
        %v381 = vpack.c.bf16 %v361, %v359
        %v382 = vpack.c.bf16 %v364, %v362
        %v383 = vpack.c.bf16 %v365, %v363
        %v384 = vpack.c.bf16 %v368, %v366
        %v385 = vpack.c.bf16 %v369, %v367
        %p386 = scmp.eq.s32.totalorder %s23, 0
        // Predicated region
        $region49: #{tpu_custom_call.1} parent=39 // pred_check
          %p387 = pneg %p386
        $region50: #{tpu_custom_call.1} parent=39 // pred_check_branch
          %389 = sbr.rel (%p387) target = $region52
        $region51: #{tpu_custom_call.1} parent=39 // pred_region
          %p390 = scmp.eq.s32.totalorder %s24, 0
          // Predicated region
          $region53: #{tpu_custom_call.1} parent=51 // pred_check
            %p391 = pneg %p390
          $region54: #{tpu_custom_call.1} parent=51 // pred_check_branch
            %393 = sbr.rel (%p391) target = $region56
          $region55: #{tpu_custom_call.1} parent=51 // pred_region
            %394 = vst [vmem:[#allocation2] sm:$0xff] 0.0
            %395 = vst [vmem:[#allocation2 + $0x8] sm:$0xff] 0.0
            %s396 = scalar_lea.smem [#allocation3], 0
            %397 = sst [smem:[%s396]] 0.0
          $region56: #{tpu_custom_call.1} parent=51 // pred_fallthru
            _
          %v398 = vld [vmem:[#allocation2] sm:$0xff]
          %v399 = vld [vmem:[#allocation2 + $0x8] sm:$0xff]
          %v402 = vunpack.c.l.b16 %v253
          %v403 = vunpack.c.h.b16 %v253
          %v404 = vunpack.c.l.b16 %v254
          %v405 = vunpack.c.h.b16 %v254
          %v406 = vpack.c.b16 %v404, %v402
          %v407 = vpack.c.b16 %v405, %v403
          %410 = vmatpush.bf16.xpose.msra.mxu0 %v384
          %411 = vmatpush.bf16.xpose.msra.mxu0 %v382
          %412 = vmatpush.bf16.xpose.msra.mxu0 %v380
          %413 = vmatpush.bf16.xpose.msra.mxu0 %v378
          %414 = vmatpush.bf16.xpose.msra.mxu0 %v376
          %415 = vmatpush.bf16.xpose.msra.mxu0 %v374
          %416 = vmatpush.bf16.xpose.msra.mxu0 %v372
          %417 = vmatpush.bf16.xpose.msra.mxu0 %v370
          %418 = vmatmul.bf16.gmra.mxu0 %v406
          %v419 = vpop.f32.mrf.mxu0
          %v420 = vadd.f32 0.0, %v419
          %v421 = vpop.f32.mrf.mxu0
          %v422 = vadd.f32 0.0, %v421
          %423 = vdwg.mxu0
          %424 = vmatpush.bf16.xpose.msra.mxu0 %v385
          %425 = vmatpush.bf16.xpose.msra.mxu0 %v383
          %426 = vmatpush.bf16.xpose.msra.mxu0 %v381
          %427 = vmatpush.bf16.xpose.msra.mxu0 %v379
          %428 = vmatpush.bf16.xpose.msra.mxu0 %v377
          %429 = vmatpush.bf16.xpose.msra.mxu0 %v375
          %430 = vmatpush.bf16.xpose.msra.mxu0 %v373
          %431 = vmatpush.bf16.xpose.msra.mxu0 %v371
          %432 = vmatmul.bf16.gmra.mxu0 %v407
          %v433 = vpop.f32.mrf.mxu0
          %v434 = vadd.f32 %v420, %v433
          %v435 = vpop.f32.mrf.mxu0
          %v436 = vadd.f32 %v422, %v435
          %437 = vdwg.mxu0
          %v438 = vadd.f32 %v398, %v434
          %v439 = vadd.f32 %v399, %v436
          %440 = vst [vmem:[#allocation2] sm:$0xff] %v438
          %441 = vst [vmem:[#allocation2 + $0x8] sm:$0xff] %v439
        $region52: #{tpu_custom_call.1} parent=39 // pred_fallthru
          _
        %p442 = scmp.eq.s32.totalorder %s23, 1
        // Predicated region
        $region57: #{tpu_custom_call.1} parent=39 // pred_check
          %p443 = pneg %p442
        $region58: #{tpu_custom_call.1} parent=39 // pred_check_branch
          %445 = sbr.rel (%p443) target = $region60
        $region59: #{tpu_custom_call.1} parent=39 // pred_region
          %p446 = scmp.eq.s32.totalorder %s24, 0
          // Predicated region
          $region61: #{tpu_custom_call.1} parent=59 // pred_check
            %p447 = pneg %p446
          $region62: #{tpu_custom_call.1} parent=59 // pred_check_branch
            %449 = sbr.rel (%p447) target = $region64
          $region63: #{tpu_custom_call.1} parent=59 // pred_region
            %v450 = vld [vmem:[#allocation2] sm:$0xff]
            %v451 = vld [vmem:[#allocation2 + $0x8] sm:$0xff]
            %v452 = vmax.f32 %v451, 1.0
            %v453 = vperm.slane %v452, 0
            %v454 = vrcp.pop %v453
            %v455 = vmul.f32 %v453, %v454
            %v456 = vsub.f32 1.0, %v455
            %v457 = vmul.f32 %v454, %v456
            %v458 = vadd.f32 %v454, %v457
            %vm459 = vweird.f32 %v453
            %vm460 = vweird.f32 %v454
            %vm461 = vmor %vm459, %vm460
            %v462 = vsel %vm461, %v454, %v458
            %v463 = vand.u32 2147483647, %v453
            %vm464 = vcmp.eq.f32.partialorder %v463, 8.507059e+37
            %v465 = vand.u32 %v453, 2147483648
            %v466 = vor.u32 1.1754944e-38, %v465
            %v467 = vsel %vm464, %v466, %v462
            %v468 = vmul.f32 %v450, %v467
            %v469 = vmul.f32 %v451, %v467
            %vm470 = vcmp.eq.s32.totalorder %v256, 8
            %vm471 = vcmp.eq.s32.totalorder %v257, 8
            %v472 = vsel %vm470, %v453, %v468
            %v473 = vsel %vm471, %v453, %v469
            %474 = vst [vmem:[#allocation2] sm:$0xff] %v472
            %475 = vst [vmem:[#allocation2 + $0x8] sm:$0xff] %v473
          $region64: #{tpu_custom_call.1} parent=59 // pred_fallthru
            _
          %v476 = vld [vmem:[#allocation2] sm:$0xff]
          %v477 = vld [vmem:[#allocation2 + $0x8] sm:$0xff]
          %v478 = vpack.c.bf16 %v477, %v476
          %479 = vmatpush.bf16.msra.mxu0 %v384
          %480 = vmatpush.bf16.msra.mxu0 %v382
          %481 = vmatpush.bf16.msra.mxu0 %v380
          %482 = vmatpush.bf16.msra.mxu0 %v378
          %483 = vmatpush.bf16.msra.mxu0 %v376
          %484 = vmatpush.bf16.msra.mxu0 %v374
          %485 = vmatpush.bf16.msra.mxu0 %v372
          %486 = vmatpush.bf16.msra.mxu0 %v370
          %487 = vmatmul.bf16.gmra.mxu0 %v478
          %v488 = vpop.f32.mrf.mxu0
          %v489 = vadd.f32 0.0, %v488
          %v490 = vpop.f32.mrf.mxu0
          %v491 = vadd.f32 0.0, %v490
          %492 = vdwg.mxu0
          %493 = vmatpush.bf16.msra.mxu0 %v385
          %494 = vmatpush.bf16.msra.mxu0 %v383
          %495 = vmatpush.bf16.msra.mxu0 %v381
          %496 = vmatpush.bf16.msra.mxu0 %v379
          %497 = vmatpush.bf16.msra.mxu0 %v377
          %498 = vmatpush.bf16.msra.mxu0 %v375
          %499 = vmatpush.bf16.msra.mxu0 %v373
          %500 = vmatpush.bf16.msra.mxu0 %v371
          %501 = vmatmul.bf16.gmra.mxu0 %v478
          %v502 = vpop.f32.mrf.mxu0
          %v503 = vadd.f32 0.0, %v502
          %v504 = vpop.f32.mrf.mxu0
          %v505 = vadd.f32 0.0, %v504
          %506 = vdwg.mxu0
          %v507 = vunpack.c.l.bf16 %v253
          %v508 = vunpack.c.h.bf16 %v253
          %v509 = vmul.f32 %v489, %v507
          %v510 = vmul.f32 %v503, %v508
          %v511 = vrot.slane %v509, 4
          %v512 = vadd.f32 %v509, %v511
          %v513 = vrot.slane %v512, 2
          %v514 = vadd.f32 %v512, %v513
          %v515 = vrot.slane %v514, 1
          %v516 = vadd.f32 %v514, %v515
          %v517 = vrot.slane %v510, 4
          %v518 = vadd.f32 %v510, %v517
          %v519 = vrot.slane %v518, 2
          %v520 = vadd.f32 %v518, %v519
          %v521 = vrot.slane %v520, 1
          %v522 = vadd.f32 %v520, %v521
          %vm523 = vcmp.ge.s32.totalorder %v252, 0
          %v524 = vsel %vm523, 1, 0
          %v525 = vcvt.s32.f32 %v524
          %v526 = vsub.f32 1.0, %v516
          %v527 = vsub.f32 1.0, %v522
          %v528 = vsub.f32 %v526, 0.1
          %v529 = vsub.f32 %v527, 0.1
          %v530 = vmax.f32 %v528, 0.0
          %v531 = vmax.f32 %v529, 0.0
          %v532 = vmax.f32 %v491, 1.0
          %v533 = vmax.f32 %v505, 1.0
          %v534 = vrcp.pop %v532
          %v535 = vmul.f32 %v532, %v534
          %v536 = vsub.f32 1.0, %v535
          %v537 = vmul.f32 %v534, %v536
          %v538 = vadd.f32 %v534, %v537
          %vm539 = vweird.f32 %v532
          %vm540 = vweird.f32 %v534
          %vm541 = vmor %vm539, %vm540
          %v542 = vsel %vm541, %v534, %v538
          %v543 = vand.u32 2147483647, %v532
          %vm544 = vcmp.eq.f32.partialorder %v543, 8.507059e+37
          %v545 = vand.u32 %v532, 2147483648
          %v546 = vor.u32 1.1754944e-38, %v545
          %v547 = vsel %vm544, %v546, %v542
          %v548 = vmul.f32 %v530, %v547
          %v549 = vrcp.pop %v533
          %v550 = vmul.f32 %v533, %v549
          %v551 = vsub.f32 1.0, %v550
          %v552 = vmul.f32 %v549, %v551
          %v553 = vadd.f32 %v549, %v552
          %vm554 = vweird.f32 %v533
          %vm555 = vweird.f32 %v549
          %vm556 = vmor %vm554, %vm555
          %v557 = vsel %vm556, %v549, %v553
          %v558 = vand.u32 2147483647, %v533
          %vm559 = vcmp.eq.f32.partialorder %v558, 8.507059e+37
          %v560 = vand.u32 %v533, 2147483648
          %v561 = vor.u32 1.1754944e-38, %v560
          %v562 = vsel %vm559, %v561, %v557
          %v563 = vmul.f32 %v531, %v562
          %s564 = sld [smem:[#allocation3]]
          %v566 = vperm.slane %v525, 0
          %v567 = vperm.slane %v525, 1
          %v570 = vmul.f32 %v548, %v566
          %v571 = vmul.f32 %v563, %v567
          %vm572 = vcmask 1040384
          %v573 = vsel %vm572, %v570, 0.0
          %v574 = vsel %vm572, %v571, 0.0
          %v575 = vadd.f32 %v573, %v574
          %576 = vadd.xlane.f32.xlu0 %v575
          %v577 = vpop.xlane.xlu0 %576
          %v578 = vrot.slane %v577, 4
          %v579 = vadd.f32 %v577, %v578
          %v580 = vrot.slane %v579, 2
          %v581 = vadd.f32 %v579, %v580
          %v582 = vrot.slane %v581, 1
          %v583 = vadd.f32 %v581, %v582
          %s584 = vtos %v583
          %v585 = vrcp.pop 16.0
          %v586 = vmul.f32 16.0, %v585
          %v587 = vsub.f32 1.0, %v586
          %v588 = vmul.f32 %v585, %v587
          %v589 = vadd.f32 %v585, %v588
          %vm590 = vweird.f32 %v585
          %v591 = vsel %vm590, %v585, %v589
          %s592 = vtos %v591
          %s593 = smul.f32 %s584, %s592
          %s594 = sadd.f32 %s564, %s593
          %s595 = scalar_lea.smem [#allocation3], 0
          %596 = sst [smem:[%s595]] %s594
          // Predicated region
          $region65: #{tpu_custom_call.1} parent=59 // pred_check
            %p597 = pneg %p446
          $region66: #{tpu_custom_call.1} parent=59 // pred_check_branch
            %599 = sbr.rel (%p597) target = $region68
          $region67: #{tpu_custom_call.1} parent=59 // pred_region
            %v600 = vld [vmem:[%s2] sm:$0x1]
            %v601 = vld [vmem:[%s3] sm:$0x1]
            %v602 = vld [vmem:[%s4] sm:$0x1]
            %v603 = vperm.slane %v600, 0
            %vm604 = vcmp.eq.s32.totalorder %v256, %v603
            %vm605 = vcmp.eq.s32.totalorder %v257, %v603
            %vm606 = vcmp.eq.s32.totalorder %v258, %v603
            %vm607 = vcmp.eq.s32.totalorder %v259, %v603
            %vm608 = vcmp.eq.s32.totalorder %v260, %v603
            %vm609 = vcmp.eq.s32.totalorder %v261, %v603
            %vm610 = vcmp.eq.s32.totalorder %v262, %v603
            %vm611 = vcmp.eq.s32.totalorder %v263, %v603
            %vm612 = vcmp.eq.s32.totalorder %v264, %v603
            %vm613 = vcmp.eq.s32.totalorder %v265, %v603
            %vm614 = vcmp.eq.s32.totalorder %v266, %v603
            %vm615 = vcmp.eq.s32.totalorder %v267, %v603
            %vm616 = vcmp.eq.s32.totalorder %v268, %v603
            %vm617 = vcmp.eq.s32.totalorder %v269, %v603
            %vm618 = vcmp.eq.s32.totalorder %v270, %v603
            %vm619 = vcmp.eq.s32.totalorder %v271, %v603
            %v620 = vsel %vm604, 1, 0
            %v621 = vsel %vm605, 1, 0
            %v622 = vsel %vm606, 1, 0
            %v623 = vsel %vm607, 1, 0
            %v624 = vsel %vm608, 1, 0
            %v625 = vsel %vm609, 1, 0
            %v626 = vsel %vm610, 1, 0
            %v627 = vsel %vm611, 1, 0
            %v628 = vsel %vm612, 1, 0
            %v629 = vsel %vm613, 1, 0
            %v630 = vsel %vm614, 1, 0
            %v631 = vsel %vm615, 1, 0
            %v632 = vsel %vm616, 1, 0
            %v633 = vsel %vm617, 1, 0
            %v634 = vsel %vm618, 1, 0
            %v635 = vsel %vm619, 1, 0
            %v636 = vcvt.s32.f32 %v620
            %v637 = vcvt.s32.f32 %v621
            %v638 = vcvt.s32.f32 %v622
            %v639 = vcvt.s32.f32 %v623
            %v640 = vcvt.s32.f32 %v624
            %v641 = vcvt.s32.f32 %v625
            %v642 = vcvt.s32.f32 %v626
            %v643 = vcvt.s32.f32 %v627
            %v644 = vcvt.s32.f32 %v628
            %v645 = vcvt.s32.f32 %v629
            %v646 = vcvt.s32.f32 %v630
            %v647 = vcvt.s32.f32 %v631
            %v648 = vcvt.s32.f32 %v632
            %v649 = vcvt.s32.f32 %v633
            %v650 = vcvt.s32.f32 %v634
            %v651 = vcvt.s32.f32 %v635
            %v652 = vpack.c.bf16 %v637, %v636
            %v653 = vpack.c.bf16 %v639, %v638
            %v654 = vpack.c.bf16 %v641, %v640
            %v655 = vpack.c.bf16 %v643, %v642
            %v656 = vpack.c.bf16 %v645, %v644
            %v657 = vpack.c.bf16 %v647, %v646
            %v658 = vpack.c.bf16 %v649, %v648
            %v659 = vpack.c.bf16 %v651, %v650
            %v660 = vperm.slane %v601, 0
            %vm661 = vcmp.eq.s32.totalorder %v256, %v660
            %vm662 = vcmp.eq.s32.totalorder %v257, %v660
            %vm663 = vcmp.eq.s32.totalorder %v258, %v660
            %vm664 = vcmp.eq.s32.totalorder %v259, %v660
            %vm665 = vcmp.eq.s32.totalorder %v260, %v660
            %vm666 = vcmp.eq.s32.totalorder %v261, %v660
            %vm667 = vcmp.eq.s32.totalorder %v262, %v660
            %vm668 = vcmp.eq.s32.totalorder %v263, %v660
            %vm669 = vcmp.eq.s32.totalorder %v264, %v660
            %vm670 = vcmp.eq.s32.totalorder %v265, %v660
            %vm671 = vcmp.eq.s32.totalorder %v266, %v660
            %vm672 = vcmp.eq.s32.totalorder %v267, %v660
            %vm673 = vcmp.eq.s32.totalorder %v268, %v660
            %vm674 = vcmp.eq.s32.totalorder %v269, %v660
            %vm675 = vcmp.eq.s32.totalorder %v270, %v660
            %vm676 = vcmp.eq.s32.totalorder %v271, %v660
            %v677 = vsel %vm661, 1, 0
            %v678 = vsel %vm662, 1, 0
            %v679 = vsel %vm663, 1, 0
            %v680 = vsel %vm664, 1, 0
            %v681 = vsel %vm665, 1, 0
            %v682 = vsel %vm666, 1, 0
            %v683 = vsel %vm667, 1, 0
            %v684 = vsel %vm668, 1, 0
            %v685 = vsel %vm669, 1, 0
            %v686 = vsel %vm670, 1, 0
            %v687 = vsel %vm671, 1, 0
            %v688 = vsel %vm672, 1, 0
            %v689 = vsel %vm673, 1, 0
            %v690 = vsel %vm674, 1, 0
            %v691 = vsel %vm675, 1, 0
            %v692 = vsel %vm676, 1, 0
            %v693 = vcvt.s32.f32 %v677
            %v694 = vcvt.s32.f32 %v678
            %v695 = vcvt.s32.f32 %v679
            %v696 = vcvt.s32.f32 %v680
            %v697 = vcvt.s32.f32 %v681
            %v698 = vcvt.s32.f32 %v682
            %v699 = vcvt.s32.f32 %v683
            %v700 = vcvt.s32.f32 %v684
            %v701 = vcvt.s32.f32 %v685
            %v702 = vcvt.s32.f32 %v686
            %v703 = vcvt.s32.f32 %v687
            %v704 = vcvt.s32.f32 %v688
            %v705 = vcvt.s32.f32 %v689
            %v706 = vcvt.s32.f32 %v690
            %v707 = vcvt.s32.f32 %v691
            %v708 = vcvt.s32.f32 %v692
            %v709 = vpack.c.bf16 %v694, %v693
            %v710 = vpack.c.bf16 %v696, %v695
            %v711 = vpack.c.bf16 %v698, %v697
            %v712 = vpack.c.bf16 %v700, %v699
            %v713 = vpack.c.bf16 %v702, %v701
            %v714 = vpack.c.bf16 %v704, %v703
            %v715 = vpack.c.bf16 %v706, %v705
            %v716 = vpack.c.bf16 %v708, %v707
            %717 = vmatpush.bf16.msra.mxu0 %v659
            %718 = vmatpush.bf16.msra.mxu0 %v658
            %719 = vmatpush.bf16.msra.mxu0 %v657
            %720 = vmatpush.bf16.msra.mxu0 %v656
            %721 = vmatpush.bf16.msra.mxu0 %v655
            %722 = vmatpush.bf16.msra.mxu0 %v654
            %723 = vmatpush.bf16.msra.mxu0 %v653
            %724 = vmatpush.bf16.msra.mxu0 %v652
            %725 = vmatmul.bf16.gmra.mxu0 %v478
            %v726 = vpop.f32.mrf.mxu0
            %v727 = vadd.f32 0.0, %v726
            %v728 = vpop.f32.mrf.mxu0
            %729 = vdwg.mxu0
            %730 = vmatpush.bf16.msra.mxu0 %v716
            %731 = vmatpush.bf16.msra.mxu0 %v715
            %732 = vmatpush.bf16.msra.mxu0 %v714
            %733 = vmatpush.bf16.msra.mxu0 %v713
            %734 = vmatpush.bf16.msra.mxu0 %v712
            %735 = vmatpush.bf16.msra.mxu0 %v711
            %736 = vmatpush.bf16.msra.mxu0 %v710
            %737 = vmatpush.bf16.msra.mxu0 %v709
            %738 = vmatmul.bf16.gmra.mxu0 %v478
            %v739 = vpop.f32.mrf.mxu0
            %v740 = vadd.f32 0.0, %v739
            %v741 = vpop.f32.mrf.mxu0
            %742 = vdwg.mxu0
            %v743 = vmul.f32 %v727, %v740
            %v744 = vrot.slane %v743, 4
            %v745 = vadd.f32 %v743, %v744
            %v746 = vrot.slane %v745, 2
            %v747 = vadd.f32 %v745, %v746
            %v748 = vrot.slane %v747, 1
            %v749 = vadd.f32 %v747, %v748
            %v750 = vsub.f32 1.0, %v749
            %v751 = vmul.f32 %v750, %v602
            %v752 = vlaneseq
            %v753 = vand.u32 %v752, 127
            %vm754 = vcmp.lt.s32.totalorder %v753, 24
            %v755 = vsub.f32 0.3, %v751
            %v756 = vmax.f32 %v755, 0.0
            %v757 = vsel %vm754, %v756, 0.0
            %v758 = vsel %vm572, %v757, 0.0
            %759 = vadd.xlane.f32.xlu0 %v758
            %v760 = vpop.xlane.xlu0 %759
            %v761 = vrot.slane %v760, 4
            %v762 = vadd.f32 %v760, %v761
            %v763 = vrot.slane %v762, 2
            %v764 = vadd.f32 %v762, %v763
            %v765 = vrot.slane %v764, 1
            %v766 = vadd.f32 %v764, %v765
            %s767 = vtos %v766
            %s768 = sadd.f32 %s767, 0.0
            %v769 = vrcp.pop 24.0
            %v770 = vmul.f32 24.0, %v769
            %v771 = vsub.f32 1.0, %v770
            %v772 = vmul.f32 %v769, %v771
            %v773 = vadd.f32 %v769, %v772
            %vm774 = vweird.f32 %v769
            %v775 = vsel %vm774, %v769, %v773
            %s776 = vtos %v775
            %s777 = smul.f32 %s768, %s776
            %s778 = sld [smem:[#allocation3]]
            %s779 = sadd.f32 %s777, %s778
            %s780 = scalar_lea.smem [#allocation9], 0
            %781 = sst [smem:[%s780]] %s779
          $region68: #{tpu_custom_call.1} parent=59 // pred_fallthru
            _
        $region60: #{tpu_custom_call.1} parent=39 // pred_fallthru
          _
        // Predicated region
        $region69: #{tpu_custom_call.1} parent=39 // pred_check
          %p782 = pneg %p159
        $region70: #{tpu_custom_call.1} parent=39 // pred_check_branch
          %784 = sbr.rel (%p782) target = $region72
        $region71: #{tpu_custom_call.1} parent=39 // pred_region
          %786 = vsyncadd [#allocation6], 0
          %s788 = sshll.u32 %s5, 4
          %s789 = int_to_ptr.hbm [resolvable:$true] %s788
          %791 = dma.smem_to_hbm [#allocation9], 16, %s789, [#allocation6]
        $region72: #{tpu_custom_call.1} parent=39 // pred_fallthru
          _
        // Predicated region
        $region73: #{tpu_custom_call.1} parent=39 // pred_check
          %p792 = pneg %p159
        $region74: #{tpu_custom_call.1} parent=39 // pred_check_branch
          %794 = sbr.rel (%p792) target = $region76
        $region75: #{tpu_custom_call.1} parent=39 // pred_region
          %796 = dma.done [#allocation6], 16
        $region76: #{tpu_custom_call.1} parent=39 // pred_fallthru
          _
        %797 = sfence
      $region40: #{tpu_custom_call.1} parent=5 // pred_fallthru
        _
      %p798 = scmp.le.s32.totalorder 2, %s14
      // Predicated region
      $region77: #{tpu_custom_call.1} parent=5 // pred_check
        %p799 = pneg %p798
      $region78: #{tpu_custom_call.1} parent=5 // pred_check_branch
        %801 = sbr.rel (%p799) target = $region80
      $region79: #{tpu_custom_call.1} parent=5 // pred_region
        %s802 = ssub.s32 %s14, 2
      $region80: #{tpu_custom_call.1} parent=5 // pred_fallthru
        _
    $region6: #{tpu_custom_call.1} parent=1 // loop_footer
      %s18 = sadd.s32 1, %s14
    $region7: #{tpu_custom_call.1} parent=1 // loop_footer_branch
      %13 = sbr.rel target = $region3
    $region8: #{tpu_custom_call.1} parent=1 // loop_exit
      _
    %803 = vsyncpa [#allocation5], 1
    %s804 = scalar_lea.sflag [#allocation5], 1
    %805 = vsyncpa %s804, 1
    %806 = vsyncpa [#allocation8], 1
    %807 = vsyncpa [#allocation6], 1
    %s808 = scalar_lea.sflag [#allocation6], 1
    %809 = vsyncpa %s808, 1

</llo_original>
